<compile_context>
chip_gen: v5e
topology: v5e:2x2
jax: 0.10.0
libtpu: 0.0.40
codegen_flags: <defaults>
</compile_context>

<pallas_src>
import functools

import jax
import jax.numpy as jnp
from jax import lax
from jax.experimental import pallas as pl
from jax.experimental.pallas import tpu as pltpu

_NEG_BIG = -1e30  # large finite fill; safer than float32 min (no -inf - -inf NaN)


def _smooth_ce_kernel(logits_ref, tgt_ref, w_ref, out_ref,
                      m_sc, se_sc, c_sc, *,
                      smoothing, v_real, tile_v, needs_vocab_mask, native_max):
    """Grid = (row_tiles [parallel], vocab_tiles [arbitrary]).

    logits_ref : (tile_r, tile_v) native dtype (ragged tails handled in-kernel)
    tgt_ref    : (tile_r, 1) int32   target token id per row
    w_ref      : (tile_r, 1) f32     mask / length per row (0 for padded rows)
    out_ref    : (1, 8, 128) f32     per-row-tile partial loss (broadcast scalar)
    m_sc/se_sc/c_sc : (tile_r, 128) f32 lane-parallel running max / sum(exp) /
                      smoothed cross term  sum_v coef_v * x_v
    """
    j = pl.program_id(1)
    n_slabs = tile_v // 128

    @pl.when(j == 0)
    def _init():
        m_sc[...] = jnp.full_like(m_sc, _NEG_BIG)
        se_sc[...] = jnp.zeros_like(se_sc)
        c_sc[...] = jnp.zeros_like(c_sc)

    on_value = jnp.float32(1.0 - smoothing)
    off_value = jnp.float32(smoothing / (v_real - 1))

    # Tile-local coordinates: one (1,128) lane iota, compared against scalars.
    lane_ids = lax.broadcasted_iota(jnp.int32, (1, 128), 1)
    tgt_local = tgt_ref[...] - j * tile_v          # (tile_r, 1) int32
    limit = v_real - j * tile_v                    # columns with local id < limit are real

    # ---- pass 1: per-lane max over this vocab tile (native dtype on v6e/v7x) ----
    tile_max = None
    for g in range(n_slabs):
        xg = logits_ref[:, pl.ds(g * 128, 128)]
        if not native_max:
            xg = xg.astype(jnp.float32)
        if needs_vocab_mask:
            valid_g = (lane_ids + g * 128) < limit
            xg = jnp.where(valid_g, xg, jnp.asarray(_NEG_BIG, dtype=xg.dtype))
        tile_max = xg if tile_max is None else jnp.maximum(tile_max, xg)
    tile_max = tile_max.astype(jnp.float32)        # (tile_r, 128)

    # Combine with running per-lane max; rescale the running sum(exp) once per step.
    m_old = m_sc[...]
    m_new = jnp.maximum(m_old, tile_max)
    se_run = se_sc[...] * jnp.exp(m_old - m_new)

    # ---- pass 2: exp-sum and smoothed cross term, accumulated per lane ----
    se_acc = None
    c_acc = None
    for g in range(n_slabs):
        xf = logits_ref[:, pl.ds(g * 128, 128)].astype(jnp.float32)
        ids_g = lane_ids + g * 128
        e = jnp.exp(xf - m_new)
        if needs_vocab_mask:
            valid_g = ids_g < limit
            e = jnp.where(valid_g, e, 0.0)         # garbage vocab tail -> 0
            xf = jnp.where(valid_g, xf, 0.0)
        coef = jnp.where(ids_g == tgt_local, on_value, off_value)
        contrib = coef * xf
        se_acc = e if se_acc is None else se_acc + e
        c_acc = contrib if c_acc is None else c_acc + contrib

    m_sc[...] = m_new
    se_sc[...] = se_run + se_acc
    c_sc[...] = c_sc[...] + c_acc

    @pl.when(j == pl.num_programs(1) - 1)
    def _finalize():
        m = m_sc[...]
        m_fin = jnp.max(m, axis=-1, keepdims=True)                       # (tile_r, 1)
        se_tot = jnp.sum(se_sc[...] * jnp.exp(m - m_fin), axis=-1, keepdims=True)
        c_tot = jnp.sum(c_sc[...], axis=-1, keepdims=True)
        lse = m_fin + jnp.log(se_tot)
        # sum_v -logp_v * onehot_v  ==  lse - sum_v coef_v * x_v   (sum_v coef_v == 1)
        loss_row = lse - c_tot
        w = w_ref[...]
        # w != 0 guard also drops ragged-row garbage (padded rows have weight 0).
        contrib = jnp.where(w != 0.0, loss_row * w, 0.0)
        out_ref[...] = jnp.zeros_like(out_ref) + jnp.sum(contrib)        # lane-dense store


def _round_up(x, m):
    return (x + m - 1) // m * m


def _choose_tile_v(vocab, lo=1024, hi=4096):
    v128 = _round_up(vocab, 128)
    if v128 <= hi:
        return v128
    # Prefer a 128-multiple divisor of V so the vocab-tail mask compiles away.
    for cand in range(hi, lo - 1, -128):
        if vocab % cand == 0:
            return cand
    return 2048  # masked tail on the last vocab tile


def _choose_tiles(num_rows, vocab, itemsize, vmem_limit):
    tile_v = _choose_tile_v(vocab)
    # Per-row VMEM estimate: double-buffered native logits block + compute temps
    # (+6 B/elem) + 3 lane-wide f32 accumulators + padded (tile_r,1) side streams.
    per_row = tile_v * (2 * itemsize + 6) + 8 * 512
    budget = int(vmem_limit * 0.75)
    tile_r = budget // per_row
    tile_r = max(8, min(4096, (tile_r // 8) * 8))
    tile_r = min(tile_r, _round_up(num_rows, 8))
    return tile_r, tile_v


def _tpu_config():
    """Generation-aware VMEM limit + whether bf16 VPU ops should be avoided."""
    kind = ""
    try:
        kind = jax.devices()[0].device_kind.lower()
    except Exception:
        pass
    vmem_cap = 0
    try:
        vmem_cap = int(pltpu.get_tpu_info().vmem_capacity_bytes)
    except Exception:
        vmem_cap = 0
    old_gen = any(t in kind for t in ("v2", "v3", "v4", "v5"))
    is_v7 = "7" in kind
    if vmem_cap <= 0:
        # 128 MiB on <= v6e, 64 MiB per TensorCore on v7x / unknown (conservative).
        vmem_cap = (128 if (old_gen or "v6" in kind) else 64) * 1024 * 1024
    vmem_limit = int(vmem_cap * 0.6)
    if is_v7:
        vmem_limit = min(vmem_limit, 40 * 1024 * 1024)
    vmem_limit = max(min(vmem_limit, 96 * 1024 * 1024), 32 * 1024 * 1024)
    return vmem_limit, old_gen


def smooth_cross_entropy_loss(logits, targets, smoothing, mask=None, lengths=None,
                              tile_r=None, tile_v=None):
    """JAX/Pallas equivalent of SmoothCrossEntropyLoss.forward (logits: (B, S, V))."""
    assert 0 <= smoothing < 1
    B, S, V = logits.shape
    assert V > 1, "smoothing / (V - 1) is undefined for a single-class vocabulary"

    # PyTorch defaults: lengths=None -> [vocab_size]; mask=None -> all ones.
    if lengths is None:
        lengths = jnp.array([V], dtype=jnp.float32)
    lengths = jnp.asarray(lengths, dtype=jnp.float32)
    num_lengths = int(lengths.shape[0])

    if mask is None:
        mask = jnp.ones((B, S), dtype=jnp.float32)
    mask = jnp.broadcast_to(jnp.asarray(mask, dtype=jnp.float32), (B, S))

    # Fold mask and 1/length into a single per-token weight.
    inv_len = 1.0 / jnp.broadcast_to(lengths, (B,))
    weights = (mask * inv_len[:, None]).reshape(B * S).astype(jnp.float32)
    tgt = targets.reshape(B * S).astype(jnp.int32)
    logits2d = logits.reshape(B * S, V)            # native dtype; never copied or padded

    vmem_limit, old_gen = _tpu_config()
    R = B * S
    auto_r, auto_v = _choose_tiles(R, V, jnp.dtype(logits.dtype).itemsize, vmem_limit)
    tile_r = auto_r if tile_r is None else max(8, _round_up(int(tile_r), 8))
    tile_v = auto_v if tile_v is None else max(128, _round_up(int(tile_v), 128))

    num_row_tiles = pl.cdiv(R, tile_r)
    num_v_tiles = pl.cdiv(V, tile_v)
    r_pad = num_row_tiles * tile_r
    needs_vocab_mask = (V % tile_v) != 0

    # Only the tiny per-row side arrays are padded (weight 0 => padded rows drop out);
    # the logits tensor is streamed unpadded and its ragged tails are handled in-kernel.
    if r_pad != R:
        tgt = jnp.pad(tgt, (0, r_pad - R))
        weights = jnp.pad(weights, (0, r_pad - R))
    tgt = tgt[:, None]
    weights = weights[:, None]

    native_max = (jnp.dtype(logits.dtype) != jnp.dtype(jnp.float32)) and not old_gen

    kernel = functools.partial(
        _smooth_ce_kernel,
        smoothing=float(smoothing), v_real=V, tile_v=tile_v,
        needs_vocab_mask=needs_vocab_mask, native_max=native_max)

    partials = pl.pallas_call(
        kernel,
        out_shape=jax.ShapeDtypeStruct((num_row_tiles, 8, 128), jnp.float32),
        grid_spec=pltpu.PrefetchScalarGridSpec(
            num_scalar_prefetch=0,
            grid=(num_row_tiles, num_v_tiles),
            in_specs=[
                pl.BlockSpec((tile_r, tile_v), lambda i, j: (i, j)),
                pl.BlockSpec((tile_r, 1), lambda i, j: (i, 0)),
                pl.BlockSpec((tile_r, 1), lambda i, j: (i, 0)),
            ],
            out_specs=pl.BlockSpec((1, 8, 128), lambda i, j: (i, 0, 0)),
            scratch_shapes=[pltpu.VMEM((tile_r, 128), jnp.float32)] * 3,
        ),
        compiler_params=pltpu.CompilerParams(
            dimension_semantics=("parallel", "arbitrary"),
            vmem_limit_bytes=vmem_limit,
        ),
    )(logits2d, tgt, weights)

    # Tiny epilogue in plain JAX: sum per-row-tile partials, divide by len(lengths).
    return jnp.sum(partials[:, 0, 0]) / num_lengths


def _reference(logits, targets, smoothing, mask=None, lengths=None):
    """Pure-JAX reference mirroring the PyTorch forward."""
    B, S, V = logits.shape
    if lengths is None:
        lengths = jnp.array([V], dtype=jnp.float32)
    lengths = jnp.asarray(lengths, dtype=jnp.float32)
    if mask is None:
        mask = jnp.array([1.0], dtype=jnp.float32)
    mask = jnp.broadcast_to(jnp.asarray(mask, dtype=jnp.float32), (B, S))

    one_hot = jnp.where(
        lax.broadcasted_iota(jnp.int32, (B, S, V), 2) == targets[..., None],
        1.0 - smoothing, smoothing / (V - 1)).astype(jnp.float32)
    logp = jax.nn.log_softmax(logits.astype(jnp.float32), axis=-1)
    loss = -logp * one_hot * mask[..., None]
    loss = loss / jnp.broadcast_to(lengths, (B,))[:, None, None]
    return jnp.sum(loss) / lengths.shape[0]


if __name__ == "__main__":
    key = jax.random.PRNGKey(0)

    def check(B, S, V, smoothing, dtype, with_mask, tile_r=None, tile_v=None):
        k1, k2 = jax.random.split(jax.random.fold_in(key, B * 100003 + S * 1009 + V))
        logits = jax.random.normal(k1, (B, S, V), dtype=jnp.float32).astype(dtype)
        targets = jax.random.randint(k2, (B, S), 0, V, dtype=jnp.int32)
        if with_mask:
            lengths = jnp.minimum(
                jnp.arange(1, B + 1, dtype=jnp.float32) + S // 2, S)
            mask = (jnp.arange(S)[None, :] < lengths[:, None]).astype(jnp.float32)
        else:
            lengths = None
            mask = None
        out = jax.block_until_ready(
            smooth_cross_entropy_loss(logits, targets, smoothing, mask, lengths,
                                      tile_r=tile_r, tile_v=tile_v))
        ref = _reference(logits.astype(jnp.float32), targets, smoothing, mask, lengths)
        assert jnp.allclose(out, ref, rtol=1e-4, atol=1e-4), (B, S, V, out, ref)

    # basic case (shapes consistent with the module), f32 logits, mask + lengths
    check(2, 8, 128, 0.1, jnp.float32, True)
    # default path (mask=None, lengths=None)
    check(2, 8, 128, 0.1, jnp.float32, False)
    # bf16 logits streamed natively; max/select in bf16 on v6e/v7x
    check(2, 8, 128, 0.1, jnp.bfloat16, True)
    # ragged rows (14 -> 16) and ragged vocab (100 % 128 != 0): in-kernel masking,
    # no HBM pad of logits
    check(2, 7, 100, 0.2, jnp.float32, True)
    # multi-vocab-tile online LSE path (tile_v = 1408 divides 4224 -> no vocab mask)
    check(2, 8, 4224, 0.1, jnp.float32, True)
    # forced tiny tiles: multiple row tiles with garbage row tail + masked vocab tail
    check(2, 7, 200, 0.1, jnp.float32, True, tile_r=8, tile_v=128)
    # bf16 + ragged vocab (mask path with bf16-native max fill)
    check(2, 8, 130, 0.1, jnp.bfloat16, True)

    print("KERNEL_OK")
</pallas_src>

<mosaic_0001>
module attributes {stable_mosaic.version = 11 : i64} {
  func.func @_smooth_ce_kernel(%arg0: i32, %arg1: i32, %arg2: memref<16x128xf32, #tpu.memory_space<vmem>>, %arg3: memref<16x1xi32, #tpu.memory_space<vmem>>, %arg4: memref<16x1xf32, #tpu.memory_space<vmem>>, %arg5: memref<1x8x128xf32, #tpu.memory_space<vmem>>, %arg6: memref<16x128xf32, #tpu.memory_space<vmem>>, %arg7: memref<16x128xf32, #tpu.memory_space<vmem>>, %arg8: memref<16x128xf32, #tpu.memory_space<vmem>>) attributes {dimension_semantics = [#tpu.dimension_semantics<parallel>, #tpu.dimension_semantics<arbitrary>], iteration_bounds = array<i64: 1, 1>, scalar_prefetch = 0 : i64, scratch_operands = 3 : i64, tpu.core_type = #tpu.core_type<tc>, window_params = [{transform_indices = @transform_0, window_bounds = array<i64: 16, 128>}, {transform_indices = @transform_1, window_bounds = array<i64: 16, 1>}, {transform_indices = @transform_2, window_bounds = array<i64: 16, 1>}, {transform_indices = @transform_3, window_bounds = array<i64: 1, 8, 128>}]} {
    %c0_i32 = arith.constant 0 : i32
    %0 = arith.cmpi eq, %arg1, %c0_i32 : i32
    %1 = arith.extui %0 : i1 to i32
    %c0_i32_0 = arith.constant 0 : i32
    %2 = arith.cmpi ne, %1, %c0_i32_0 : i32
    scf.if %2 {
      %cst_22 = arith.constant -1.000000e+30 : f32
      %36 = vector.broadcast %cst_22 : f32 to vector<16x128xf32>
      %c0_23 = arith.constant 0 : index
      %c0_24 = arith.constant 0 : index
      %37 = vector.load %arg6[%c0_23, %c0_24] : memref<16x128xf32, #tpu.memory_space<vmem>>, vector<16x128xf32>
      tpu.vector_store %arg6[%c0_23, %c0_24], %36 {strides = array<i32>} : memref<16x128xf32, #tpu.memory_space<vmem>>, vector<16x128xf32>,
      %cst_25 = arith.constant 0.000000e+00 : f32
      %38 = vector.broadcast %cst_25 : f32 to vector<16x128xf32>
      %c0_26 = arith.constant 0 : index
      %c0_27 = arith.constant 0 : index
      %39 = vector.load %arg7[%c0_26, %c0_27] : memref<16x128xf32, #tpu.memory_space<vmem>>, vector<16x128xf32>
      tpu.vector_store %arg7[%c0_26, %c0_27], %38 {strides = array<i32>} : memref<16x128xf32, #tpu.memory_space<vmem>>, vector<16x128xf32>,
      %cst_28 = arith.constant 0.000000e+00 : f32
      %40 = vector.broadcast %cst_28 : f32 to vector<16x128xf32>
      %c0_29 = arith.constant 0 : index
      %c0_30 = arith.constant 0 : index
      %41 = vector.load %arg8[%c0_29, %c0_30] : memref<16x128xf32, #tpu.memory_space<vmem>>, vector<16x128xf32>
      tpu.vector_store %arg8[%c0_29, %c0_30], %40 {strides = array<i32>} : memref<16x128xf32, #tpu.memory_space<vmem>>, vector<16x128xf32>,
    } else {
    }
    %3 = tpu.iota {dimensions = array<i32: 1>} : vector<1x128xi32>
    %c0 = arith.constant 0 : index
    %c0_1 = arith.constant 0 : index
    %4 = vector.load %arg3[%c0, %c0_1] : memref<16x1xi32, #tpu.memory_space<vmem>>, vector<16x1xi32>
    %c128_i32 = arith.constant 128 : i32
    %5 = arith.muli %arg1, %c128_i32 : i32
    %6 = vector.broadcast %5 : i32 to vector<16x1xi32>
    %7 = arith.subi %4, %6 : vector<16x1xi32>
    %c0_2 = arith.constant 0 : index
    %c0_3 = arith.constant 0 : index
    %8 = vector.load %arg2[%c0_2, %c0_3] : memref<16x128xf32, #tpu.memory_space<vmem>>, vector<16x128xf32>
    %c0_4 = arith.constant 0 : index
    %c0_5 = arith.constant 0 : index
    %9 = vector.load %arg6[%c0_4, %c0_5] : memref<16x128xf32, #tpu.memory_space<vmem>>, vector<16x128xf32>
    %10 = arith.maximumf %9, %8 : vector<16x128xf32>
    %c0_6 = arith.constant 0 : index
    %c0_7 = arith.constant 0 : index
    %11 = vector.load %arg7[%c0_6, %c0_7] : memref<16x128xf32, #tpu.memory_space<vmem>>, vector<16x128xf32>
    %12 = arith.subf %9, %10 : vector<16x128xf32>
    %13 = math.exp %12 : vector<16x128xf32>
    %14 = arith.mulf %11, %13 : vector<16x128xf32>
    %c0_8 = arith.constant 0 : index
    %c0_9 = arith.constant 0 : index
    %15 = vector.load %arg2[%c0_8, %c0_9] : memref<16x128xf32, #tpu.memory_space<vmem>>, vector<16x128xf32>
    %c0_i32_10 = arith.constant 0 : i32
    %16 = vector.broadcast %c0_i32_10 : i32 to vector<1x128xi32>
    %17 = arith.addi %3, %16 : vector<1x128xi32>
    %18 = arith.subf %15, %10 : vector<16x128xf32>
    %19 = math.exp %18 : vector<16x128xf32>
    %20 = vector.broadcast %17 : vector<1x128xi32> to vector<16x128xi32>
    %21 = vector.broadcast %7 : vector<16x1xi32> to vector<16x128xi32>
    %22 = arith.cmpi eq, %20, %21 : vector<16x128xi32>
    %cst = arith.constant 0.899999976 : f32
    %cst_11 = arith.constant 7.87401571E-4 : f32
    %23 = vector.broadcast %cst : f32 to vector<16x128xf32>
    %24 = vector.broadcast %cst_11 : f32 to vector<16x128xf32>
    %25 = arith.select %22, %23, %24 : vector<16x128xi1>, vector<16x128xf32>
    %26 = arith.mulf %25, %15 : vector<16x128xf32>
    %c0_12 = arith.constant 0 : index
    %c0_13 = arith.constant 0 : index
    %27 = vector.load %arg6[%c0_12, %c0_13] : memref<16x128xf32, #tpu.memory_space<vmem>>, vector<16x128xf32>
    tpu.vector_store %arg6[%c0_12, %c0_13], %10 {strides = array<i32>} : memref<16x128xf32, #tpu.memory_space<vmem>>, vector<16x128xf32>,
    %28 = arith.addf %14, %19 : vector<16x128xf32>
    %c0_14 = arith.constant 0 : index
    %c0_15 = arith.constant 0 : index
    %29 = vector.load %arg7[%c0_14, %c0_15] : memref<16x128xf32, #tpu.memory_space<vmem>>, vector<16x128xf32>
    tpu.vector_store %arg7[%c0_14, %c0_15], %28 {strides = array<i32>} : memref<16x128xf32, #tpu.memory_space<vmem>>, vector<16x128xf32>,
    %c0_16 = arith.constant 0 : index
    %c0_17 = arith.constant 0 : index
    %30 = vector.load %arg8[%c0_16, %c0_17] : memref<16x128xf32, #tpu.memory_space<vmem>>, vector<16x128xf32>
    %31 = arith.addf %30, %26 : vector<16x128xf32>
    %c0_18 = arith.constant 0 : index
    %c0_19 = arith.constant 0 : index
    %32 = vector.load %arg8[%c0_18, %c0_19] : memref<16x128xf32, #tpu.memory_space<vmem>>, vector<16x128xf32>
    tpu.vector_store %arg8[%c0_18, %c0_19], %31 {strides = array<i32>} : memref<16x128xf32, #tpu.memory_space<vmem>>, vector<16x128xf32>,
    %c0_i32_20 = arith.constant 0 : i32
    %33 = arith.cmpi eq, %arg1, %c0_i32_20 : i32
    %34 = arith.extui %33 : i1 to i32
    %c0_i32_21 = arith.constant 0 : i32
    %35 = arith.cmpi ne, %34, %c0_i32_21 : i32
    scf.if %35 {
      %c0_22 = arith.constant 0 : index
      %c0_23 = arith.constant 0 : index
      %36 = vector.load %arg6[%c0_22, %c0_23] : memref<16x128xf32, #tpu.memory_space<vmem>>, vector<16x128xf32>
      %cst_24 = arith.constant dense<0xFF800000> : vector<16xf32>
      %37 = vector.multi_reduction <maximumf>, %36, %cst_24 [1] : vector<16x128xf32> to vector<16xf32>
      %38 = vector.shape_cast %37 : vector<16xf32> to vector<16x1xf32>
      %c0_25 = arith.constant 0 : index
      %c0_26 = arith.constant 0 : index
      %39 = vector.load %arg7[%c0_25, %c0_26] : memref<16x128xf32, #tpu.memory_space<vmem>>, vector<16x128xf32>
      %40 = vector.broadcast %38 : vector<16x1xf32> to vector<16x128xf32>
      %41 = arith.subf %36, %40 : vector<16x128xf32>
      %42 = math.exp %41 : vector<16x128xf32>
      %43 = arith.mulf %39, %42 : vector<16x128xf32>
      %cst_27 = arith.constant dense<0.000000e+00> : vector<16xf32>
      %44 = vector.multi_reduction <add>, %43, %cst_27 [1] : vector<16x128xf32> to vector<16xf32>
      %45 = vector.shape_cast %44 : vector<16xf32> to vector<16x1xf32>
      %c0_28 = arith.constant 0 : index
      %c0_29 = arith.constant 0 : index
      %46 = vector.load %arg8[%c0_28, %c0_29] : memref<16x128xf32, #tpu.memory_space<vmem>>, vector<16x128xf32>
      %cst_30 = arith.constant dense<0.000000e+00> : vector<16xf32>
      %47 = vector.multi_reduction <add>, %46, %cst_30 [1] : vector<16x128xf32> to vector<16xf32>
      %48 = vector.shape_cast %47 : vector<16xf32> to vector<16x1xf32>
      %49 = math.log %45 : vector<16x1xf32>
      %50 = arith.addf %38, %49 : vector<16x1xf32>
      %51 = arith.subf %50, %48 : vector<16x1xf32>
      %c0_31 = arith.constant 0 : index
      %c0_32 = arith.constant 0 : index
      %52 = vector.load %arg4[%c0_31, %c0_32] : memref<16x1xf32, #tpu.memory_space<vmem>>, vector<16x1xf32>
      %cst_33 = arith.constant 0.000000e+00 : f32
      %53 = vector.broadcast %cst_33 : f32 to vector<16x1xf32>
      %54 = arith.cmpf one, %52, %53 : vector<16x1xf32>
      %55 = arith.mulf %51, %52 : vector<16x1xf32>
      %cst_34 = arith.constant 0.000000e+00 : f32
      %56 = vector.broadcast %cst_34 : f32 to vector<16x1xf32>
      %57 = arith.select %54, %55, %56 : vector<16x1xi1>, vector<16x1xf32>
      %cst_35 = arith.constant 0.000000e+00 : f32
      %58 = vector.broadcast %cst_35 : f32 to vector<1x8x128xf32>
      %59 = vector.shape_cast %57 : vector<16x1xf32> to vector<1x16x1xf32>
      %cst_36 = arith.constant dense<0.000000e+00> : vector<1xf32>
      %60 = vector.multi_reduction <add>, %59, %cst_36 [1, 2] : vector<1x16x1xf32> to vector<1xf32>
      %61 = vector.shape_cast %60 : vector<1xf32> to vector<1x1x1xf32>
      %62 = vector.extract %61[0, 0, 0] : f32 from vector<1x1x1xf32>
      %63 = vector.broadcast %62 : f32 to vector<1x8x128xf32>
      %64 = arith.addf %58, %63 : vector<1x8x128xf32>
      %c0_37 = arith.constant 0 : index
      %c0_38 = arith.constant 0 : index
      %c0_39 = arith.constant 0 : index
      %65 = vector.load %arg5[%c0_37, %c0_38, %c0_39] : memref<1x8x128xf32, #tpu.memory_space<vmem>>, vector<1x8x128xf32>
      tpu.vector_store %arg5[%c0_37, %c0_38, %c0_39], %64 {strides = array<i32>} : memref<1x8x128xf32, #tpu.memory_space<vmem>>, vector<1x8x128xf32>,
    } else {
    }
    return
  }
  func.func @transform_0(%arg0: i32, %arg1: i32) -> (i32, i32) {
    %c0_i32 = arith.constant 0 : i32
    return %arg0, %arg1 : i32, i32
  }
  func.func @transform_1(%arg0: i32, %arg1: i32) -> (i32, i32) {
    %c0_i32 = arith.constant 0 : i32
    %c0_i32_0 = arith.constant 0 : i32
    return %arg0, %c0_i32 : i32, i32
  }
  func.func @transform_2(%arg0: i32, %arg1: i32) -> (i32, i32) {
    %c0_i32 = arith.constant 0 : i32
    %c0_i32_0 = arith.constant 0 : i32
    return %arg0, %c0_i32 : i32, i32
  }
  func.func @transform_3(%arg0: i32, %arg1: i32) -> (i32, i32, i32) {
    %c0_i32 = arith.constant 0 : i32
    %c0_i32_0 = arith.constant 0 : i32
    %c0_i32_1 = arith.constant 0 : i32
    return %arg0, %c0_i32, %c0_i32_0 : i32, i32, i32
  }
}

</mosaic_0001>

<llo_original>
// kernel: tpu_custom_call.1
$region0: #{tpu_custom_call.1}
  #allocation0 [shape = 'u32[]', space=smem, size = 0x4, offset = 0x4, fixed_abs, tag = 'smem constant byte address 0x4 - core index']
  #allocation1 [shape = 'u32[72,128]{1,0:T(1,128)}', space=vmem, size = 0x9000, scoped, tag = 'internal scratch']
  #allocation2 [shape = 'f32[16,128]{1,0:T(8,128)}', space=vmem, size = 0x2000, scoped, tag = 'scratch operand']
  #allocation3 [shape = 'f32[16,128]{1,0:T(8,128)}', space=vmem, size = 0x2000, scoped, tag = 'scratch operand']
  #allocation4 [shape = 'f32[16,128]{1,0:T(8,128)}', space=vmem, size = 0x2000, scoped, tag = 'scratch operand']
  %s0 = inlined_call_operand.vmem [shape: f32[16,128], index: 0, kind: input, shape index: {}]
  %s1 = inlined_call_operand.vmem [shape: s32[16,1], index: 1, kind: input, shape index: {}]
  %s2 = inlined_call_operand.vmem [shape: f32[16,1], index: 2, kind: input, shape index: {}]
  %s3 = inlined_call_operand.hbm [shape: f32[1,8,128], index: 3, kind: output, shape index: {}]
  %s4 = sld [smem:[#allocation0]]
  $region30: #{tpu_custom_call.1} parent=0
    _
  %s6 = ssub.s32 1, %s4
  %s7 = scalar_select 0, %s6, %s4
  $region1: #{tpu_custom_call.1} parent=0
    #allocation5 [shape = 'u8[4096]{0}', space=vmem, size = 0x1000, scoped, tag = 'output window, operand 0, single buffered']
    #allocation6 [shape = 's32[1]{0}', space=sflag, size = 0x4, scoped, tag = 'scoped memory for tpu_custom_call.1']
    %8 = vsyncpa [#allocation6], 0
    // Predicated region
    $region2: #{tpu_custom_call.1} parent=1 // pred_check
      _
    $region3: #{tpu_custom_call.1} parent=1 // pred_check_branch
      %10 = sbr.rel (0) target = $region5
    $region4: #{tpu_custom_call.1} parent=1 // pred_region
      _
    $region5: #{tpu_custom_call.1} parent=1 // pred_fallthru
      _
    // Predicated region
    $region6: #{tpu_custom_call.1} parent=1 // pred_check
      _
    $region7: #{tpu_custom_call.1} parent=1 // pred_check_branch
      %12 = sbr.rel (0) target = $region9
    $region8: #{tpu_custom_call.1} parent=1 // pred_region
      _
    $region9: #{tpu_custom_call.1} parent=1 // pred_fallthru
      _
    // Predicated region
    $region10: #{tpu_custom_call.1} parent=1 // pred_check
      _
    $region11: #{tpu_custom_call.1} parent=1 // pred_check_branch
      %14 = sbr.rel (0) target = $region13
    $region12: #{tpu_custom_call.1} parent=1 // pred_region
      _
    $region13: #{tpu_custom_call.1} parent=1 // pred_fallthru
      _
    %p15 = scmp.eq.s32.totalorder 0, 0
    // Predicated region
    $region14: #{tpu_custom_call.1} parent=1 // pred_check
      %p16 = pneg %p15
    $region15: #{tpu_custom_call.1} parent=1 // pred_check_branch
      %18 = sbr.rel (%p16) target = $region17
    $region16: #{tpu_custom_call.1} parent=1 // pred_region
      %19 = vst [vmem:[#allocation2] sm:$0xff] -1e+30
      %20 = vst [vmem:[#allocation2 + $0x8] sm:$0xff] -1e+30
      %21 = vst [vmem:[#allocation3] sm:$0xff] 0.0
      %22 = vst [vmem:[#allocation3 + $0x8] sm:$0xff] 0.0
      %23 = vst [vmem:[#allocation4] sm:$0xff] 0.0
      %24 = vst [vmem:[#allocation4 + $0x8] sm:$0xff] 0.0
    $region17: #{tpu_custom_call.1} parent=1 // pred_fallthru
      _
    %v25 = vlaneseq
    %v26 = vand.u32 %v25, 127
    %v27 = vld [vmem:[%s1] sm:$0xff]
    %v28 = vld [vmem:[%s1 + $0x8] sm:$0xff]
    %s29 = smul.u32 0, 128
    %v30 = vstv %s29
    %v31 = vsub.s32 %v27, %v30
    %v32 = vsub.s32 %v28, %v30
    %v33 = vld [vmem:[%s0] sm:$0xff]
    %v34 = vld [vmem:[%s0 + $0x8] sm:$0xff]
    %v35 = vld [vmem:[#allocation2] sm:$0xff]
    %v36 = vld [vmem:[#allocation2 + $0x8] sm:$0xff]
    %v37 = vmax.f32 %v35, %v33
    %v38 = vmax.f32 %v36, %v34
    %v39 = vld [vmem:[#allocation3] sm:$0xff]
    %v40 = vld [vmem:[#allocation3 + $0x8] sm:$0xff]
    %v41 = vsub.f32 %v35, %v37
    %v42 = vsub.f32 %v36, %v38
    %v43 = vmul.f32 %v41, 1.442695
    %v44 = vpow.pop %v43
    %v45 = vmul.f32 %v42, 1.442695
    %v46 = vpow.pop %v45
    %v47 = vmul.f32 %v39, %v44
    %v48 = vmul.f32 %v40, %v46
    %v49 = vsub.f32 %v33, %v37
    %v50 = vsub.f32 %v34, %v38
    %v51 = vmul.f32 %v49, 1.442695
    %v52 = vpow.pop %v51
    %v53 = vmul.f32 %v50, 1.442695
    %v54 = vpow.pop %v53
    %55 = vset.pattern.permute.xlu0 0
    %56 = vperm.xlu0 %55, %v31
    %v57 = vpop.permute.xlu0 %56
    %58 = vset.pattern.permute.xlu0 0
    %59 = vperm.xlu0 %58, %v32
    %v60 = vpop.permute.xlu0 %59
    %vm61 = vcmp.eq.s32.totalorder %v26, %v57
    %vm62 = vcmp.eq.s32.totalorder %v26, %v60
    %v63 = vsel %vm61, 0.9, 0.0007874016
    %v64 = vsel %vm62, 0.9, 0.0007874016
    %v65 = vmul.f32 %v63, %v33
    %v66 = vmul.f32 %v64, %v34
    %67 = vst [vmem:[#allocation2] sm:$0xff] %v37
    %68 = vst [vmem:[#allocation2 + $0x8] sm:$0xff] %v38
    %v69 = vadd.f32 %v47, %v52
    %v70 = vadd.f32 %v48, %v54
    %71 = vst [vmem:[#allocation3] sm:$0xff] %v69
    %72 = vst [vmem:[#allocation3 + $0x8] sm:$0xff] %v70
    %v73 = vld [vmem:[#allocation4] sm:$0xff]
    %v74 = vld [vmem:[#allocation4 + $0x8] sm:$0xff]
    %v75 = vadd.f32 %v73, %v65
    %v76 = vadd.f32 %v74, %v66
    %77 = vst [vmem:[#allocation4] sm:$0xff] %v75
    %78 = vst [vmem:[#allocation4 + $0x8] sm:$0xff] %v76
    // Predicated region
    $region18: #{tpu_custom_call.1} parent=1 // pred_check
      %p79 = pneg %p15
    $region19: #{tpu_custom_call.1} parent=1 // pred_check_branch
      %81 = sbr.rel (%p79) target = $region21
    $region20: #{tpu_custom_call.1} parent=1 // pred_region
      %v82 = vld [vmem:[#allocation2] sm:$0xff]
      %v83 = vld [vmem:[#allocation2 + $0x8] sm:$0xff]
      %84 = vmax.xlane.f32.xlu0 %v82
      %v85 = vpop.xlane.xlu0 %84
      %86 = vmax.xlane.f32.xlu0 %v83
      %v87 = vpop.xlane.xlu0 %86
      %v88 = vld [vmem:[#allocation3] sm:$0xff]
      %v89 = vld [vmem:[#allocation3 + $0x8] sm:$0xff]
      %v90 = vsub.f32 %v82, %v85
      %v91 = vsub.f32 %v83, %v87
      %v92 = vmul.f32 %v90, 1.442695
      %v93 = vpow.pop %v92
      %v94 = vmul.f32 %v91, 1.442695
      %v95 = vpow.pop %v94
      %v96 = vmul.f32 %v88, %v93
      %v97 = vmul.f32 %v89, %v95
      %98 = vadd.xlane.f32.xlu0 %v96
      %v99 = vpop.xlane.xlu0 %98
      %100 = vadd.xlane.f32.xlu0 %v97
      %v101 = vpop.xlane.xlu0 %100
      %v102 = vld [vmem:[#allocation4] sm:$0xff]
      %v103 = vld [vmem:[#allocation4 + $0x8] sm:$0xff]
      %104 = vadd.xlane.f32.xlu0 %v102
      %v105 = vpop.xlane.xlu0 %104
      %106 = vadd.xlane.f32.xlu0 %v103
      %v107 = vpop.xlane.xlu0 %106
      %v108 = vlog2.pop %v99
      %v109 = vmul.f32 %v108, 0.6931472
      %v110 = vlog2.pop %v101
      %v111 = vmul.f32 %v110, 0.6931472
      %v112 = vadd.f32 %v85, %v109
      %v113 = vadd.f32 %v87, %v111
      %v114 = vsub.f32 %v112, %v105
      %v115 = vsub.f32 %v113, %v107
      %v116 = vld [vmem:[%s2] sm:$0xff]
      %v117 = vld [vmem:[%s2 + $0x8] sm:$0xff]
      %vm118 = vcmp.ne.f32.partialorder %v116, 0.0
      %vm119 = vcmp.ne.f32.partialorder %v117, 0.0
      %v120 = vmul.f32 %v114, %v116
      %v121 = vmul.f32 %v115, %v117
      %v122 = vsel %vm118, %v120, 0.0
      %v123 = vsel %vm119, %v121, 0.0
      %vm124 = vcmask 7168
      %v125 = vsel %vm124, %v122, 0.0
      %v126 = vsel %vm124, %v123, 0.0
      %v127 = vadd.f32 %v125, %v126
      %128 = vadd.xlane.f32.xlu0 %v127
      %v129 = vpop.xlane.xlu0 %128
      %v130 = vrot.slane %v129, 4
      %v131 = vadd.f32 %v129, %v130
      %v132 = vrot.slane %v131, 2
      %v133 = vadd.f32 %v131, %v132
      %v134 = vrot.slane %v133, 1
      %v135 = vadd.f32 %v133, %v134
      %s136 = vtos %v135
      %v137 = vstv %s136
      %v138 = vadd.f32 %v137, 0.0
      %139 = vst [vmem:[#allocation5] sm:$0xff] %v138
    $region21: #{tpu_custom_call.1} parent=1 // pred_fallthru
      _
    // Predicated region
    $region22: #{tpu_custom_call.1} parent=1 // pred_check
      _
    $region23: #{tpu_custom_call.1} parent=1 // pred_check_branch
      %141 = sbr.rel (0) target = $region25
    $region24: #{tpu_custom_call.1} parent=1 // pred_region
      %143 = vsyncadd [#allocation6], 0
      %s145 = sshll.u32 [#allocation5], 4
      %s146 = int_to_ptr.vmem [resolvable:$true] %s145
      %s147 = sshll.u32 %s3, 4
      %s148 = int_to_ptr.hbm [resolvable:$true] %s147
      %150 = dma.vmem_to_hbm [thread:$0]  %s146, 128, %s148, [#allocation6]
    $region25: #{tpu_custom_call.1} parent=1 // pred_fallthru
      _
    // Predicated region
    $region26: #{tpu_custom_call.1} parent=1 // pred_check
      _
    $region27: #{tpu_custom_call.1} parent=1 // pred_check_branch
      %152 = sbr.rel (0) target = $region29
    $region28: #{tpu_custom_call.1} parent=1 // pred_region
      %154 = dma.done [#allocation6], 128
    $region29: #{tpu_custom_call.1} parent=1 // pred_fallthru
      _
    %155 = vsyncpa [#allocation6], 1

</llo_original>
